<compile_context>
chip_gen: v6e
topology: v6e:2x2x1
jax: 0.10.0
libtpu: 0.0.40
codegen_flags: <defaults>
</compile_context>

<pallas_src>
import math

import jax
import jax.numpy as jnp
from jax.experimental import pallas as pl
from jax.experimental.pallas import tpu as pltpu


def _round_up(x, m):
    return ((x + m - 1) // m) * m


def _vmem_cap_bytes():
    """Physical VMEM per core (generation-aware), with a conservative fallback."""
    try:
        info = pltpu.get_tpu_info()
        cap = int(getattr(info, "vmem_capacity_bytes", 0))
        if cap > 0:
            return cap
    except Exception:
        pass
    return 64 * 1024 * 1024  # conservative (v7x-sized) fallback


_HAS_BUFFERED = hasattr(pl, "Buffered")


def _resident_spec(shape):
    """BlockSpec for an operand that stays resident in VMEM across the grid.
    Single-buffered (constant index_map => never re-fetched)."""
    idx_map = lambda i: (0,) * len(shape)
    if _HAS_BUFFERED:
        return pl.BlockSpec(shape, idx_map, pipeline_mode=pl.Buffered(1))
    return pl.BlockSpec(shape, idx_map)


def coder_kernel(x_ref, w1_ref, b1_ref, w2_ref, b2_ref, o_ref):
    # x_ref : [TB, In_p]      w1_ref: [In_p, H_p]    b1_ref: [1, H_p]
    # w2_ref: [H_p, Out_p]    b2_ref: [1, Out_p]     o_ref : [TB, Out_p]
    x = x_ref[...]

    # First linear: NN-layout matmul on the MXU, f32 accumulation, f32 bias add.
    h = jnp.dot(x, w1_ref[...], preferred_element_type=jnp.float32) + b1_ref[...]

    # LeakyReLU(0.01): identical to where(h>0, h, 0.01h) for slope < 1.
    h = jnp.maximum(h, 0.01 * h)

    # Second linear.
    y = jnp.dot(h.astype(w2_ref.dtype), w2_ref[...],
                preferred_element_type=jnp.float32) + b2_ref[...]

    o_ref[...] = y.astype(o_ref.dtype)


def prepare_coder_params(w1, b1, w2, b2, *, compute_dtype=None):
    """One-time layout prep (hoist this out of the per-step forward!).

    w1: [H, In], b1: [H], w2: [Out, H], b2: [Out]  (PyTorch Linear layout)
    Transposes to NN layout and zero-pads feature dims to multiples of 128 so
    all kernel matmuls/stores are lane-dense.  Padded columns are zero, so they
    never leak into real outputs (LeakyReLU(0) == 0)."""
    H, In = w1.shape
    Out, H_w = w2.shape
    assert H == H_w, "weight shapes inconsistent with Coder"

    cdt = jnp.dtype(compute_dtype) if compute_dtype is not None else jnp.dtype(w1.dtype)
    In_p, H_p, Out_p = (_round_up(d, 128) for d in (In, H, Out))

    w1t = jnp.zeros((In_p, H_p), cdt).at[:In, :H].set(w1.T.astype(cdt))
    w2t = jnp.zeros((H_p, Out_p), cdt).at[:H, :Out].set(w2.T.astype(cdt))
    b1p = jnp.zeros((1, H_p), jnp.float32).at[0, :H].set(b1.astype(jnp.float32))
    b2p = jnp.zeros((1, Out_p), jnp.float32).at[0, :Out].set(b2.astype(jnp.float32))

    return dict(w1=w1t, b1=b1p, w2=w2t, b2=b2p,
                dims=(In, H, Out), padded=(In_p, H_p, Out_p), cdt=cdt)


def coder_apply(params, x, *, block_b=None, out_dtype=None):
    """Per-step forward with pre-prepared (NN-layout, padded) params."""
    B, In = x.shape
    In_d, H, Out = params["dims"]
    assert In == In_d, "activation feature dim inconsistent with prepared params"
    In_p, H_p, Out_p = params["padded"]
    cdt = params["cdt"]
    out_dtype = jnp.dtype(out_dtype) if out_dtype is not None else jnp.dtype(x.dtype)

    vmem_cap = _vmem_cap_bytes()
    if block_b is None:
        # Larger batch tiles on 128 MiB parts (v5e/v6e); smaller on v7x (64 MiB).
        block_b = 1024 if vmem_cap >= 96 * 1024 * 1024 else 512

    # Batch tile: multiple of 8 (f32) / 16 (bf16) sublanes.
    sub = 16 if cdt == jnp.dtype(jnp.bfloat16) else 8
    tb = _round_up(min(block_b, max(B, sub)), sub)
    if B > sub:
        # Guarantee >= 2 batch tiles so the "parallel" axis can shard across
        # v7x's two TensorCores (harmless on single-TC v5e/v6e).
        tb = min(tb, _round_up(pl.cdiv(B, 2), sub))
    tb = _round_up(max(tb, sub), sub)
    B_p = _round_up(B, tb)

    # Pad activations only when it is not a no-op.
    if (B_p != B) or (In_p != In):
        xp = jnp.zeros((B_p, In_p), cdt).at[:B, :In].set(x.astype(cdt))
    else:
        xp = x.astype(cdt)

    grid = (B_p // tb,)

    # VMEM budget: single-buffered resident weights/biases, double-buffered
    # x/out tiles, single f32 hidden temporary.
    wbytes = (In_p * H_p + H_p * Out_p) * cdt.itemsize + (H_p + Out_p) * 4
    vmem_est = (wbytes
                + 2 * tb * In_p * cdt.itemsize
                + 2 * tb * Out_p * out_dtype.itemsize
                + tb * H_p * 4)
    vmem_limit = min(max(32 * 1024 * 1024, (vmem_est * 5) // 4),
                     int(0.85 * vmem_cap))

    out_padded = pl.pallas_call(
        coder_kernel,
        out_shape=jax.ShapeDtypeStruct((B_p, Out_p), out_dtype),
        grid_spec=pltpu.PrefetchScalarGridSpec(
            num_scalar_prefetch=0,
            grid=grid,
            in_specs=[
                pl.BlockSpec((tb, In_p), lambda i: (i, 0)),  # x tile (pipelined)
                _resident_spec((In_p, H_p)),                 # w1 (resident, 1-buf)
                _resident_spec((1, H_p)),                    # b1
                _resident_spec((H_p, Out_p)),                # w2
                _resident_spec((1, Out_p)),                  # b2
            ],
            out_specs=pl.BlockSpec((tb, Out_p), lambda i: (i, 0)),
        ),
        compiler_params=pltpu.CompilerParams(
            dimension_semantics=("parallel",),
            vmem_limit_bytes=int(vmem_limit),
        ),
    )(xp, params["w1"], params["b1"], params["w2"], params["b2"])

    # Slice back only when padding was actually added.
    if (B_p == B) and (Out_p == Out):
        return out_padded
    return out_padded[:B, :Out]


def coder_forward(x, w1, b1, w2, b2, *, block_b=None, compute_dtype=None):
    """Convenience wrapper taking PyTorch-layout weights.

    In a real training/serving loop, call prepare_coder_params ONCE (or let it
    be constant-folded under an outer jit) and reuse the result with
    coder_apply so the weight transpose+pad is not paid every step."""
    params = prepare_coder_params(w1, b1, w2, b2, compute_dtype=compute_dtype)
    return coder_apply(params, x, block_b=block_b, out_dtype=x.dtype)


def init_coder_params(key, input_shape, output_shape):
    """Mirror Coder.__init__/reset_parameters:
       weights ~ N(0, 0.1); biases keep PyTorch Linear default
       U(-1/sqrt(fan_in), 1/sqrt(fan_in))."""
    hidden = max(input_shape, output_shape)
    k1, k2, k3, k4 = jax.random.split(key, 4)
    w1 = 0.1 * jax.random.normal(k1, (hidden, input_shape), jnp.float32)
    w2 = 0.1 * jax.random.normal(k2, (output_shape, hidden), jnp.float32)
    bound1 = 1.0 / math.sqrt(input_shape)
    bound2 = 1.0 / math.sqrt(hidden)
    b1 = jax.random.uniform(k3, (hidden,), jnp.float32, -bound1, bound1)
    b2 = jax.random.uniform(k4, (output_shape,), jnp.float32, -bound2, bound2)
    return w1, b1, w2, b2


if __name__ == "__main__":
    input_shape, output_shape = 32, 16   # hidden = max(32, 16) = 32
    batch = 8

    key = jax.random.PRNGKey(0)
    kx, kp = jax.random.split(key)
    x = jax.random.normal(kx, (batch, input_shape), jnp.float32)
    w1, b1, w2, b2 = init_coder_params(kp, input_shape, output_shape)

    # Pure-JAX reference of the same forward semantics.
    h_ref = x @ w1.T + b1
    h_ref = jnp.where(h_ref > 0, h_ref, 0.01 * h_ref)
    y_ref = h_ref @ w2.T + b2

    # f32 path, weights prepared once and re-used (bitwise-comparable accumulation).
    params_f32 = prepare_coder_params(w1, b1, w2, b2)
    y = coder_apply(params_f32, x)
    y = jax.block_until_ready(y)
    assert y.shape == (batch, output_shape)
    assert jnp.allclose(y, y_ref, atol=1e-5, rtol=1e-5)

    # Convenience wrapper path.
    y2 = jax.block_until_ready(coder_forward(x, w1, b1, w2, b2))
    assert jnp.allclose(y2, y_ref, atol=1e-5, rtol=1e-5)

    # bf16 MXU path (f32 accumulation) — recommended default on v6e/v7x.
    params_bf16 = prepare_coder_params(w1, b1, w2, b2, compute_dtype=jnp.bfloat16)
    y_bf16 = jax.block_until_ready(coder_apply(params_bf16, x, out_dtype=jnp.float32))
    assert y_bf16.shape == (batch, output_shape)
    assert jnp.allclose(y_bf16, y_ref, atol=3e-2, rtol=3e-2)

    print("KERNEL_OK")
</pallas_src>

<mosaic_0001>
module attributes {stable_mosaic.version = 11 : i64} {
  func.func @coder_kernel(%arg0: i32, %arg1: memref<8x128xf32, #tpu.memory_space<vmem>>, %arg2: memref<128x128xf32, #tpu.memory_space<vmem>>, %arg3: memref<1x128xf32, #tpu.memory_space<vmem>>, %arg4: memref<128x128xf32, #tpu.memory_space<vmem>>, %arg5: memref<1x128xf32, #tpu.memory_space<vmem>>, %arg6: memref<8x128xf32, #tpu.memory_space<vmem>>) attributes {dimension_semantics = [#tpu.dimension_semantics<parallel>], iteration_bounds = array<i64: 1>, scalar_prefetch = 0 : i64, scratch_operands = 0 : i64, tpu.core_type = #tpu.core_type<tc>, window_params = [{transform_indices = @transform_0, window_bounds = array<i64: 8, 128>}, {pipeline_mode = #tpu.pipeline_mode<synchronous>, transform_indices = @transform_1, window_bounds = array<i64: 128, 128>}, {pipeline_mode = #tpu.pipeline_mode<synchronous>, transform_indices = @transform_2, window_bounds = array<i64: 1, 128>}, {pipeline_mode = #tpu.pipeline_mode<synchronous>, transform_indices = @transform_3, window_bounds = array<i64: 128, 128>}, {pipeline_mode = #tpu.pipeline_mode<synchronous>, transform_indices = @transform_4, window_bounds = array<i64: 1, 128>}, {transform_indices = @transform_5, window_bounds = array<i64: 8, 128>}]} {
    %c0 = arith.constant 0 : index
    %c0_0 = arith.constant 0 : index
    %0 = vector.load %arg1[%c0, %c0_0] : memref<8x128xf32, #tpu.memory_space<vmem>>, vector<8x128xf32>
    %c0_1 = arith.constant 0 : index
    %c0_2 = arith.constant 0 : index
    %1 = vector.load %arg2[%c0_1, %c0_2] : memref<128x128xf32, #tpu.memory_space<vmem>>, vector<128x128xf32>
    %cst = arith.constant dense<0.000000e+00> : vector<8x128xf32>
    %2 = tpu.matmul %0, %1, %cst {dimension_numbers = #tpu.dot_dimension_numbers<[1], [0], [0], [1], [0, 0, 1, 1], [], []>} : vector<8x128xf32>, vector<128x128xf32>, vector<8x128xf32> -> vector<8x128xf32>
    %c0_3 = arith.constant 0 : index
    %c0_4 = arith.constant 0 : index
    %3 = vector.load %arg3[%c0_3, %c0_4] : memref<1x128xf32, #tpu.memory_space<vmem>>, vector<1x128xf32>
    %4 = vector.broadcast %3 : vector<1x128xf32> to vector<8x128xf32>
    %5 = arith.addf %2, %4 : vector<8x128xf32>
    %cst_5 = arith.constant 0.00999999977 : f32
    %6 = vector.broadcast %cst_5 : f32 to vector<8x128xf32>
    %7 = arith.mulf %6, %5 : vector<8x128xf32>
    %8 = arith.maximumf %5, %7 : vector<8x128xf32>
    %c0_6 = arith.constant 0 : index
    %c0_7 = arith.constant 0 : index
    %9 = vector.load %arg4[%c0_6, %c0_7] : memref<128x128xf32, #tpu.memory_space<vmem>>, vector<128x128xf32>
    %cst_8 = arith.constant dense<0.000000e+00> : vector<8x128xf32>
    %10 = tpu.matmul %8, %9, %cst_8 {dimension_numbers = #tpu.dot_dimension_numbers<[1], [0], [0], [1], [0, 0, 1, 1], [], []>} : vector<8x128xf32>, vector<128x128xf32>, vector<8x128xf32> -> vector<8x128xf32>
    %c0_9 = arith.constant 0 : index
    %c0_10 = arith.constant 0 : index
    %11 = vector.load %arg5[%c0_9, %c0_10] : memref<1x128xf32, #tpu.memory_space<vmem>>, vector<1x128xf32>
    %12 = vector.broadcast %11 : vector<1x128xf32> to vector<8x128xf32>
    %13 = arith.addf %10, %12 : vector<8x128xf32>
    %c0_11 = arith.constant 0 : index
    %c0_12 = arith.constant 0 : index
    %14 = vector.load %arg6[%c0_11, %c0_12] : memref<8x128xf32, #tpu.memory_space<vmem>>, vector<8x128xf32>
    tpu.vector_store %arg6[%c0_11, %c0_12], %13 {strides = array<i32>} : memref<8x128xf32, #tpu.memory_space<vmem>>, vector<8x128xf32>,
    return
  }
  func.func @transform_0(%arg0: i32) -> (i32, i32) {
    %c0_i32 = arith.constant 0 : i32
    %c0_i32_0 = arith.constant 0 : i32
    return %arg0, %c0_i32 : i32, i32
  }
  func.func @transform_1(%arg0: i32) -> (i32, i32) {
    %c0_i32 = arith.constant 0 : i32
    %c0_i32_0 = arith.constant 0 : i32
    %c0_i32_1 = arith.constant 0 : i32
    return %c0_i32, %c0_i32_0 : i32, i32
  }
  func.func @transform_2(%arg0: i32) -> (i32, i32) {
    %c0_i32 = arith.constant 0 : i32
    %c0_i32_0 = arith.constant 0 : i32
    %c0_i32_1 = arith.constant 0 : i32
    return %c0_i32, %c0_i32_0 : i32, i32
  }
  func.func @transform_3(%arg0: i32) -> (i32, i32) {
    %c0_i32 = arith.constant 0 : i32
    %c0_i32_0 = arith.constant 0 : i32
    %c0_i32_1 = arith.constant 0 : i32
    return %c0_i32, %c0_i32_0 : i32, i32
  }
  func.func @transform_4(%arg0: i32) -> (i32, i32) {
    %c0_i32 = arith.constant 0 : i32
    %c0_i32_0 = arith.constant 0 : i32
    %c0_i32_1 = arith.constant 0 : i32
    return %c0_i32, %c0_i32_0 : i32, i32
  }
  func.func @transform_5(%arg0: i32) -> (i32, i32) {
    %c0_i32 = arith.constant 0 : i32
    %c0_i32_0 = arith.constant 0 : i32
    return %arg0, %c0_i32 : i32, i32
  }
}

</mosaic_0001>

<llo_original>
// kernel: tpu_custom_call.1
$region0: #{tpu_custom_call.1}
  #allocation0 [shape = 'u32[]', space=smem, size = 0x4, offset = 0x4, fixed_abs, tag = 'smem constant byte address 0x4 - core index']
  #allocation1 [shape = 'u32[144,128]{1,0:T(1,128)}', space=vmem, size = 0x12000, scoped, tag = 'internal scratch']
  %s0 = inlined_call_operand.hbm [shape: f32[8,128], index: 0, kind: input, shape index: {}]
  %s1 = inlined_call_operand.hbm [shape: f32[128,128], index: 1, kind: input, shape index: {}]
  %s2 = inlined_call_operand.vmem [shape: f32[1,128], index: 2, kind: input, shape index: {}]
  %s3 = inlined_call_operand.hbm [shape: f32[128,128], index: 3, kind: input, shape index: {}]
  %s4 = inlined_call_operand.vmem [shape: f32[1,128], index: 4, kind: input, shape index: {}]
  %s5 = inlined_call_operand.hbm [shape: f32[8,128], index: 5, kind: output, shape index: {}]
  %s6 = sld [smem:[#allocation0]]
  $region42: #{tpu_custom_call.1} parent=0
    _
  %s8 = ssub.s32 1, %s6
  %s9 = scalar_select 0, %s8, %s6
  $region1: #{tpu_custom_call.1} parent=0
    #allocation2 [shape = 'u8[4096]{0}', space=vmem, size = 0x1000, scoped, tag = 'input window, operand 0, single buffered']
    #allocation3 [shape = 's32[1]{0}', space=sflag, size = 0x4, scoped, tag = 'scoped memory for tpu_custom_call.1']
    #allocation4 [shape = 's32[1]{0}', space=sflag, size = 0x4, scoped, tag = 'scoped memory for tpu_custom_call.1']
    #allocation5 [shape = 'u8[65536]{0}', space=vmem, size = 0x10000, scoped, tag = 'input window, operand 1, single buffered']
    #allocation6 [shape = 's32[1]{0}', space=sflag, size = 0x4, scoped, tag = 'scoped memory for tpu_custom_call.1']
    #allocation7 [shape = 'u8[65536]{0}', space=vmem, size = 0x10000, scoped, tag = 'input window, operand 3, single buffered']
    #allocation8 [shape = 'u8[4096]{0}', space=vmem, size = 0x1000, scoped, tag = 'output window, operand 0, single buffered']
    %10 = vsyncpa [#allocation3], 0
    %11 = vsyncpa [#allocation6], 0
    %12 = vsyncpa [#allocation4], 0
    // Predicated region
    $region2: #{tpu_custom_call.1} parent=1 // pred_check
      _
    $region3: #{tpu_custom_call.1} parent=1 // pred_check_branch
      %14 = sbr.rel (0) target = $region5
    $region4: #{tpu_custom_call.1} parent=1 // pred_region
      %s16 = ssub.s32 128, 128
      %17 = vsyncadd [#allocation3], %s16
      %s19 = sshll.u32 [#allocation2], 4
      %s20 = int_to_ptr.vmem [resolvable:$true] %s19
      %22 = dma.hbm_to_vmem [thread:$0]  %s0, 128, %s20, [#allocation3]
    $region5: #{tpu_custom_call.1} parent=1 // pred_fallthru
      _
    // Predicated region
    $region6: #{tpu_custom_call.1} parent=1 // pred_check
      _
    $region7: #{tpu_custom_call.1} parent=1 // pred_check_branch
      %24 = sbr.rel (0) target = $region9
    $region8: #{tpu_custom_call.1} parent=1 // pred_region
      %s26 = ssub.s32 2048, 2048
      %27 = vsyncadd [#allocation6], %s26
      %s28 = sshll.u32 [#allocation5], 4
      %s29 = int_to_ptr.vmem [resolvable:$true] %s28
      %34 = dma.hbm_to_vmem [thread:$0]  %s1, 2048, %s29, [#allocation6], 128, 128, 8
    $region9: #{tpu_custom_call.1} parent=1 // pred_fallthru
      _
    // Predicated region
    $region10: #{tpu_custom_call.1} parent=1 // pred_check
      _
    $region11: #{tpu_custom_call.1} parent=1 // pred_check_branch
      %36 = sbr.rel (0) target = $region13
    $region12: #{tpu_custom_call.1} parent=1 // pred_region
      _
    $region13: #{tpu_custom_call.1} parent=1 // pred_fallthru
      _
    // Predicated region
    $region14: #{tpu_custom_call.1} parent=1 // pred_check
      _
    $region15: #{tpu_custom_call.1} parent=1 // pred_check_branch
      %38 = sbr.rel (0) target = $region17
    $region16: #{tpu_custom_call.1} parent=1 // pred_region
      %s40 = ssub.s32 2048, 2048
      %41 = vsyncadd [#allocation6], %s40
      %s42 = sshll.u32 [#allocation7], 4
      %s43 = int_to_ptr.vmem [resolvable:$true] %s42
      %48 = dma.hbm_to_vmem [thread:$0]  %s3, 2048, %s43, [#allocation6], 128, 128, 8
    $region17: #{tpu_custom_call.1} parent=1 // pred_fallthru
      _
    // Predicated region
    $region18: #{tpu_custom_call.1} parent=1 // pred_check
      _
    $region19: #{tpu_custom_call.1} parent=1 // pred_check_branch
      %50 = sbr.rel (0) target = $region21
    $region20: #{tpu_custom_call.1} parent=1 // pred_region
      _
    $region21: #{tpu_custom_call.1} parent=1 // pred_fallthru
      _
    // Predicated region
    $region22: #{tpu_custom_call.1} parent=1 // pred_check
      _
    $region23: #{tpu_custom_call.1} parent=1 // pred_check_branch
      %52 = sbr.rel (0) target = $region25
    $region24: #{tpu_custom_call.1} parent=1 // pred_region
      %53 = dma.done [#allocation3], 128
    $region25: #{tpu_custom_call.1} parent=1 // pred_fallthru
      _
    // Predicated region
    $region26: #{tpu_custom_call.1} parent=1 // pred_check
      _
    $region27: #{tpu_custom_call.1} parent=1 // pred_check_branch
      %55 = sbr.rel (0) target = $region29
    $region28: #{tpu_custom_call.1} parent=1 // pred_region
      %56 = dma.done [#allocation6], 2048
    $region29: #{tpu_custom_call.1} parent=1 // pred_fallthru
      _
    // Predicated region
    $region30: #{tpu_custom_call.1} parent=1 // pred_check
      _
    $region31: #{tpu_custom_call.1} parent=1 // pred_check_branch
      %58 = sbr.rel (0) target = $region33
    $region32: #{tpu_custom_call.1} parent=1 // pred_region
      %59 = dma.done [#allocation6], 2048
    $region33: #{tpu_custom_call.1} parent=1 // pred_fallthru
      _
    %v60 = vld [vmem:[#allocation2] sm:$0xff]
    %v61 = vld [vmem:[#allocation5] sm:$0xff]
    %v62 = vld [vmem:[#allocation5 + $0x8] sm:$0xff]
    %v63 = vld [vmem:[#allocation5 + $0x10] sm:$0xff]
    %v64 = vld [vmem:[#allocation5 + $0x18] sm:$0xff]
    %v65 = vld [vmem:[#allocation5 + $0x20] sm:$0xff]
    %v66 = vld [vmem:[#allocation5 + $0x28] sm:$0xff]
    %v67 = vld [vmem:[#allocation5 + $0x30] sm:$0xff]
    %v68 = vld [vmem:[#allocation5 + $0x38] sm:$0xff]
    %v69 = vld [vmem:[#allocation5 + $0x40] sm:$0xff]
    %v70 = vld [vmem:[#allocation5 + $0x48] sm:$0xff]
    %v71 = vld [vmem:[#allocation5 + $0x50] sm:$0xff]
    %v72 = vld [vmem:[#allocation5 + $0x58] sm:$0xff]
    %v73 = vld [vmem:[#allocation5 + $0x60] sm:$0xff]
    %v74 = vld [vmem:[#allocation5 + $0x68] sm:$0xff]
    %v75 = vld [vmem:[#allocation5 + $0x70] sm:$0xff]
    %v76 = vld [vmem:[#allocation5 + $0x78] sm:$0xff]
    %v77 = vld [vmem:[%s2] sm:$0x1]
    %v79 = vlaneseq
    %v80 = vshrl.u32 %v79, 7
    %v81 = vsub.s32 0, %v80
    %v82 = vrot.slane %v77, %v81
    %84 = vmatprep.subr.mxu0 0.0
    %85 = vmatpush1.msra.mxu0 %v76
    %86 = vmatprep.subr.mxu0 0.0
    %87 = vmatpush1.msra.mxu0 %v75
    %88 = vmatprep.subr.mxu0 0.0
    %89 = vmatpush1.msra.mxu0 %v74
    %90 = vmatprep.subr.mxu0 0.0
    %91 = vmatpush1.msra.mxu0 %v73
    %92 = vmatprep.subr.mxu0 0.0
    %93 = vmatpush1.msra.mxu0 %v72
    %94 = vmatprep.subr.mxu0 0.0
    %95 = vmatpush1.msra.mxu0 %v71
    %96 = vmatprep.subr.mxu0 0.0
    %97 = vmatpush1.msra.mxu0 %v70
    %98 = vmatprep.subr.mxu0 0.0
    %99 = vmatpush1.msra.mxu0 %v69
    %100 = vmatprep.subr.mxu0 0.0
    %101 = vmatpush1.msra.mxu0 %v68
    %102 = vmatprep.subr.mxu0 0.0
    %103 = vmatpush1.msra.mxu0 %v67
    %104 = vmatprep.subr.mxu0 0.0
    %105 = vmatpush1.msra.mxu0 %v66
    %106 = vmatprep.subr.mxu0 0.0
    %107 = vmatpush1.msra.mxu0 %v65
    %108 = vmatprep.subr.mxu0 0.0
    %109 = vmatpush1.msra.mxu0 %v64
    %110 = vmatprep.subr.mxu0 0.0
    %111 = vmatpush1.msra.mxu0 %v63
    %112 = vmatprep.subr.mxu0 0.0
    %113 = vmatpush1.msra.mxu0 %v62
    %114 = vmatprep.subr.mxu0 0.0
    %115 = vmatpush1.msra.mxu0 %v61
    %116 = vmatprep.subr.mxu0 0.0
    %117 = vmatpush2.msra.mxu0 0.0
    %118 = vmatprep.subr.mxu0 0.0
    %119 = vmatpush2.msra.mxu0 0.0
    %120 = vmatprep.subr.mxu0 0.0
    %121 = vmatpush2.msra.mxu0 0.0
    %122 = vmatprep.subr.mxu0 0.0
    %123 = vmatpush2.msra.mxu0 0.0
    %124 = vmatprep.subr.mxu0 0.0
    %125 = vmatpush2.msra.mxu0 0.0
    %126 = vmatprep.subr.mxu0 0.0
    %127 = vmatpush2.msra.mxu0 0.0
    %128 = vmatprep.subr.mxu0 0.0
    %129 = vmatpush2.msra.mxu0 0.0
    %130 = vmatprep.subr.mxu0 0.0
    %131 = vmatpush2.msra.mxu0 0.0
    %132 = vmatprep.subr.mxu0 0.0
    %133 = vmatpush2.msra.mxu0 0.0
    %134 = vmatprep.subr.mxu0 0.0
    %135 = vmatpush2.msra.mxu0 0.0
    %136 = vmatprep.subr.mxu0 0.0
    %137 = vmatpush2.msra.mxu0 0.0
    %138 = vmatprep.subr.mxu0 0.0
    %139 = vmatpush2.msra.mxu0 0.0
    %140 = vmatprep.subr.mxu0 0.0
    %141 = vmatpush2.msra.mxu0 0.0
    %142 = vmatprep.subr.mxu0 0.0
    %143 = vmatpush2.msra.mxu0 0.0
    %144 = vmatprep.subr.mxu0 0.0
    %145 = vmatpush2.msra.mxu0 0.0
    %146 = vmatprep.subr.mxu0 0.0
    %147 = vmatpush2.msra.mxu0 0.0
    %148 = vmatprep.mubr.f32.mxu0 0.0
    %149 = vmatmul.mubr.f32.gmra.mxu0 %v60
    %v150 = vpop.f32.mrf.mxu0
    %v151 = vadd.f32 %v82, %v150
    %v152 = vpop.f32.mrf.mxu0
    %153 = vdwg.mxu0
    %v154 = vmul.f32 %v151, 0.01
    %v155 = vmax.f32 %v151, %v154
    %v156 = vld [vmem:[#allocation7] sm:$0xff]
    %v157 = vld [vmem:[#allocation7 + $0x8] sm:$0xff]
    %v158 = vld [vmem:[#allocation7 + $0x10] sm:$0xff]
    %v159 = vld [vmem:[#allocation7 + $0x18] sm:$0xff]
    %v160 = vld [vmem:[#allocation7 + $0x20] sm:$0xff]
    %v161 = vld [vmem:[#allocation7 + $0x28] sm:$0xff]
    %v162 = vld [vmem:[#allocation7 + $0x30] sm:$0xff]
    %v163 = vld [vmem:[#allocation7 + $0x38] sm:$0xff]
    %v164 = vld [vmem:[#allocation7 + $0x40] sm:$0xff]
    %v165 = vld [vmem:[#allocation7 + $0x48] sm:$0xff]
    %v166 = vld [vmem:[#allocation7 + $0x50] sm:$0xff]
    %v167 = vld [vmem:[#allocation7 + $0x58] sm:$0xff]
    %v168 = vld [vmem:[#allocation7 + $0x60] sm:$0xff]
    %v169 = vld [vmem:[#allocation7 + $0x68] sm:$0xff]
    %v170 = vld [vmem:[#allocation7 + $0x70] sm:$0xff]
    %v171 = vld [vmem:[#allocation7 + $0x78] sm:$0xff]
    %v172 = vld [vmem:[%s4] sm:$0x1]
    %v174 = vlaneseq
    %v175 = vshrl.u32 %v174, 7
    %v176 = vsub.s32 0, %v175
    %v177 = vrot.slane %v172, %v176
    %179 = vmatprep.subr.mxu0 0.0
    %180 = vmatpush1.msra.mxu0 %v171
    %181 = vmatprep.subr.mxu0 0.0
    %182 = vmatpush1.msra.mxu0 %v170
    %183 = vmatprep.subr.mxu0 0.0
    %184 = vmatpush1.msra.mxu0 %v169
    %185 = vmatprep.subr.mxu0 0.0
    %186 = vmatpush1.msra.mxu0 %v168
    %187 = vmatprep.subr.mxu0 0.0
    %188 = vmatpush1.msra.mxu0 %v167
    %189 = vmatprep.subr.mxu0 0.0
    %190 = vmatpush1.msra.mxu0 %v166
    %191 = vmatprep.subr.mxu0 0.0
    %192 = vmatpush1.msra.mxu0 %v165
    %193 = vmatprep.subr.mxu0 0.0
    %194 = vmatpush1.msra.mxu0 %v164
    %195 = vmatprep.subr.mxu0 0.0
    %196 = vmatpush1.msra.mxu0 %v163
    %197 = vmatprep.subr.mxu0 0.0
    %198 = vmatpush1.msra.mxu0 %v162
    %199 = vmatprep.subr.mxu0 0.0
    %200 = vmatpush1.msra.mxu0 %v161
    %201 = vmatprep.subr.mxu0 0.0
    %202 = vmatpush1.msra.mxu0 %v160
    %203 = vmatprep.subr.mxu0 0.0
    %204 = vmatpush1.msra.mxu0 %v159
    %205 = vmatprep.subr.mxu0 0.0
    %206 = vmatpush1.msra.mxu0 %v158
    %207 = vmatprep.subr.mxu0 0.0
    %208 = vmatpush1.msra.mxu0 %v157
    %209 = vmatprep.subr.mxu0 0.0
    %210 = vmatpush1.msra.mxu0 %v156
    %211 = vmatprep.subr.mxu0 0.0
    %212 = vmatpush2.msra.mxu0 0.0
    %213 = vmatprep.subr.mxu0 0.0
    %214 = vmatpush2.msra.mxu0 0.0
    %215 = vmatprep.subr.mxu0 0.0
    %216 = vmatpush2.msra.mxu0 0.0
    %217 = vmatprep.subr.mxu0 0.0
    %218 = vmatpush2.msra.mxu0 0.0
    %219 = vmatprep.subr.mxu0 0.0
    %220 = vmatpush2.msra.mxu0 0.0
    %221 = vmatprep.subr.mxu0 0.0
    %222 = vmatpush2.msra.mxu0 0.0
    %223 = vmatprep.subr.mxu0 0.0
    %224 = vmatpush2.msra.mxu0 0.0
    %225 = vmatprep.subr.mxu0 0.0
    %226 = vmatpush2.msra.mxu0 0.0
    %227 = vmatprep.subr.mxu0 0.0
    %228 = vmatpush2.msra.mxu0 0.0
    %229 = vmatprep.subr.mxu0 0.0
    %230 = vmatpush2.msra.mxu0 0.0
    %231 = vmatprep.subr.mxu0 0.0
    %232 = vmatpush2.msra.mxu0 0.0
    %233 = vmatprep.subr.mxu0 0.0
    %234 = vmatpush2.msra.mxu0 0.0
    %235 = vmatprep.subr.mxu0 0.0
    %236 = vmatpush2.msra.mxu0 0.0
    %237 = vmatprep.subr.mxu0 0.0
    %238 = vmatpush2.msra.mxu0 0.0
    %239 = vmatprep.subr.mxu0 0.0
    %240 = vmatpush2.msra.mxu0 0.0
    %241 = vmatprep.subr.mxu0 0.0
    %242 = vmatpush2.msra.mxu0 0.0
    %243 = vmatprep.mubr.f32.mxu0 0.0
    %244 = vmatmul.mubr.f32.gmra.mxu0 %v155
    %v245 = vpop.f32.mrf.mxu0
    %v246 = vadd.f32 %v177, %v245
    %v247 = vpop.f32.mrf.mxu0
    %248 = vdwg.mxu0
    %249 = vst [vmem:[#allocation8] sm:$0xff] %v246
    // Predicated region
    $region34: #{tpu_custom_call.1} parent=1 // pred_check
      _
    $region35: #{tpu_custom_call.1} parent=1 // pred_check_branch
      %251 = sbr.rel (0) target = $region37
    $region36: #{tpu_custom_call.1} parent=1 // pred_region
      %s253 = ssub.s32 128, 128
      %254 = vsyncadd [#allocation4], %s253
      %s256 = sshll.u32 [#allocation8], 4
      %s257 = int_to_ptr.vmem [resolvable:$true] %s256
      %259 = dma.vmem_to_hbm [thread:$0]  %s257, 128, %s5, [#allocation4]
    $region37: #{tpu_custom_call.1} parent=1 // pred_fallthru
      _
    // Predicated region
    $region38: #{tpu_custom_call.1} parent=1 // pred_check
      _
    $region39: #{tpu_custom_call.1} parent=1 // pred_check_branch
      %261 = sbr.rel (0) target = $region41
    $region40: #{tpu_custom_call.1} parent=1 // pred_region
      %262 = dma.done [#allocation4], 128
    $region41: #{tpu_custom_call.1} parent=1 // pred_fallthru
      _
    %263 = vsyncpa [#allocation3], 1
    %264 = vsyncpa [#allocation6], 1
    %265 = vsyncpa [#allocation4], 1

</llo_original>
